<compile_context>
chip_gen: v7x
topology: tpu7x:2x2x1
jax: 0.10.0
libtpu: 0.0.40
codegen_flags: <defaults>
</compile_context>

<pallas_src>
import jax
import jax.numpy as jnp
from jax.experimental import pallas as pl
from jax.experimental.pallas import tpu as pltpu


def _make_kernel(activation_fn):
    def kernel(x_ref, xkb_ref, wa_ref, w1_ref, w2g_ref, bias_ref, out_ref, h_ref):
        j = pl.program_id(1)
        w_dtype = wa_ref.dtype

        # Stage the lateral hidden state once per batch tile and reuse it for
        # every output-column tile: h = activation(x_kb @ W1^T).
        # Requires the j axis to be "arbitrary" (sequential, innermost).
        @pl.when(j == 0)
        def _():
            xkb = xkb_ref[...]
            if xkb.dtype != w_dtype:            # static (trace-time) branch
                xkb = xkb.astype(w_dtype)       # in-kernel cast, hidden under MXU
            h = jnp.dot(xkb, w1_ref[...], preferred_element_type=jnp.float32)
            h_ref[...] = activation_fn(h).astype(h_ref.dtype)

        x = x_ref[...]
        if x.dtype != w_dtype:                  # static (trace-time) branch
            x = x.astype(w_dtype)

        # Single f32 accumulator: active path + gate-folded lateral path.
        acc = jnp.dot(x, wa_ref[...], preferred_element_type=jnp.float32)
        acc = acc + jnp.dot(h_ref[...], w2g_ref[...],
                            preferred_element_type=jnp.float32)

        # bias is a (1, tile_n) f32 row, broadcast over the batch rows.
        out_ref[...] = activation_fn(acc + bias_ref[...]).astype(out_ref.dtype)

    return kernel


def prepare_params(w_active, b_active, w_lat1, w_lat2, gates,
                   *, param_dtype=jnp.bfloat16):
    """One-time layout conversion -- call OUTSIDE the hot path.

    PyTorch layouts: w_active / w_lat1: [n_out, n_in]; w_lat2: [n_out, n_out];
    b_active / gates: [n_out].
    Kernel layouts: weights as [in, out] in `param_dtype`; gates folded into the
    second lateral weight (exact); bias kept f32 as a (1, n_out) row.
    """
    gates = jnp.asarray(gates, jnp.float32)
    wa_t = jnp.asarray(w_active, jnp.float32).T.astype(param_dtype)   # [n_in, n_out]
    w1_t = jnp.asarray(w_lat1, jnp.float32).T.astype(param_dtype)     # [n_in, n_out]
    # gates * (h @ W2^T) == h @ (W2^T * gates[None, :])  (per-output-column scale)
    w2g = (jnp.asarray(w_lat2, jnp.float32).T * gates[None, :]).astype(param_dtype)  # [n_out, n_out]
    bias = jnp.asarray(b_active, jnp.float32).reshape(1, -1)           # [1, n_out]
    return wa_t, w1_t, w2g, bias


def _pick_tile(dim, preferred, unit):
    """Largest multiple of `unit` that divides `dim` and is <= preferred; else `dim`."""
    t = min(preferred, dim)
    t -= t % unit
    while t >= unit:
        if dim % t == 0:
            return t
        t -= unit
    return dim


def active_linear(x, x_kb, params, *, activation_fn=None,
                  tile_b=256, tile_n=256, out_dtype=None):
    """x, x_kb: [B, n_in]; params from prepare_params(). Returns [B, n_out]."""
    wa_t, w1_t, w2g, bias = params
    B, n_in = x.shape
    n_out = wa_t.shape[1]
    compute_dtype = wa_t.dtype
    out_dtype = out_dtype or x.dtype
    if activation_fn is None:
        # The PyTorch module takes `activation` as a constructor arg; pass any
        # elementwise jnp callable here (default: ReLU).
        activation_fn = lambda v: jnp.maximum(v, 0.0)

    # Tile selection respecting the (8, 128) layout rule (tiles always divide
    # the array exactly, or cover the full dim).
    tile_n = _pick_tile(n_out, tile_n, 128)
    tile_b = _pick_tile(B, tile_b, 8)
    # Keep >= 2 batch tiles so the "parallel" axis can span both v7x TensorCores.
    if tile_b == B and B >= 16 and (B // 2) % 8 == 0:
        tile_b = B // 2

    grid_b = pl.cdiv(B, tile_b)
    grid_n = pl.cdiv(n_out, tile_n)
    grid = (grid_b, grid_n)

    w_isz = jnp.dtype(compute_dtype).itemsize
    out_isz = jnp.dtype(out_dtype).itemsize

    # Explicit VMEM budget: double-buffered pipelined blocks + resident W1 +
    # the staged-h scratch, with headroom for Mosaic internal scratch.
    buf_bytes = (
        2 * tile_b * n_in * x.dtype.itemsize          # x tiles
        + 2 * tile_b * n_in * x_kb.dtype.itemsize     # x_kb tiles
        + 2 * n_in * tile_n * w_isz                   # Wa^T column tiles
        + 1 * n_in * n_out * w_isz                    # W1^T (resident, single-buffered)
        + 2 * n_out * tile_n * w_isz                  # W2g column tiles
        + 2 * tile_n * 4                              # bias tiles (f32)
        + 2 * tile_b * tile_n * out_isz               # output tiles
        + tile_b * n_out * w_isz                      # staged h scratch
    )
    vmem_limit = max(32 << 20, min(int(buf_bytes * 1.25) + (2 << 20), 96 << 20))

    # Advisory cost hint. Wa/W2g are re-streamed once per batch tile; W1, the
    # activations, bias and output are touched once. transcendentals=0 assumes
    # a non-transcendental activation (ReLU default).
    flops = 4 * B * n_in * n_out + 2 * B * n_out * n_out
    bytes_accessed = (
        x.size * x.dtype.itemsize + x_kb.size * x_kb.dtype.itemsize
        + w1_t.size * w_isz
        + grid_b * (wa_t.size + w2g.size) * w_isz
        + bias.size * 4
        + B * n_out * out_isz
    )

    return pl.pallas_call(
        _make_kernel(activation_fn),
        out_shape=jax.ShapeDtypeStruct((B, n_out), out_dtype),
        grid=grid,
        in_specs=[
            pl.BlockSpec((tile_b, n_in), lambda i, j: (i, 0)),       # x rows
            pl.BlockSpec((tile_b, n_in), lambda i, j: (i, 0)),       # x_kb rows
            pl.BlockSpec((n_in, tile_n), lambda i, j: (0, j)),       # Wa^T cols
            pl.BlockSpec((n_in, n_out), lambda i, j: (0, 0),         # W1^T resident,
                         pipeline_mode=pl.Buffered(1)),              #   single buffer
            pl.BlockSpec((n_out, tile_n), lambda i, j: (0, j)),      # W2g cols (gates folded)
            pl.BlockSpec((1, tile_n), lambda i, j: (0, j)),          # bias cols
        ],
        out_specs=pl.BlockSpec((tile_b, tile_n), lambda i, j: (i, j)),
        scratch_shapes=[pltpu.VMEM((tile_b, n_out), compute_dtype)],  # staged h
        compiler_params=pltpu.CompilerParams(
            dimension_semantics=("parallel", "arbitrary"),
            vmem_limit_bytes=vmem_limit),
        cost_estimate=pl.CostEstimate(
            flops=flops, transcendentals=0, bytes_accessed=bytes_accessed),
    )(x, x_kb, wa_t, w1_t, w2g, bias)


def _reference(x, x_kb, w_active, b_active, w_lat1, w_lat2, gates):
    hp = jax.lax.Precision.HIGHEST
    act = jnp.matmul(x, w_active.T, precision=hp) + b_active
    h = jnp.maximum(jnp.matmul(x_kb, w_lat1.T, precision=hp), 0.0)
    lat = jnp.matmul(h, w_lat2.T, precision=hp)
    return jnp.maximum(act + gates * lat, 0.0)


def _make_case(key, B, n_in, n_out):
    ks = jax.random.split(key, 7)
    x = jax.random.normal(ks[0], (B, n_in), jnp.float32)
    x_kb = jax.random.normal(ks[1], (B, n_in), jnp.float32)
    w_active = jax.random.normal(ks[2], (n_out, n_in), jnp.float32) * 0.1   # linear_active.weight
    b_active = jax.random.normal(ks[3], (n_out,), jnp.float32) * 0.1        # linear_active.bias
    w_lat1 = jax.random.normal(ks[4], (n_out, n_in), jnp.float32) * 0.1     # linear_lateral[0].weight
    w_lat2 = jax.random.normal(ks[5], (n_out, n_out), jnp.float32) * 0.1    # linear_lateral[2].weight
    gates = jax.random.uniform(ks[6], (n_out,), jnp.float32) * 0.1          # gates param
    return x, x_kb, w_active, b_active, w_lat1, w_lat2, gates


if __name__ == "__main__":
    key = jax.random.PRNGKey(0)
    k0, k1 = jax.random.split(key)

    # Case 1: lane-aligned shapes. B=128 -> two batch tiles of 64 (megacore),
    # n_out=256 -> single 256-wide output tile.
    B, n_in, n_out = 128, 256, 256
    x, x_kb, w_active, b_active, w_lat1, w_lat2, gates = _make_case(k0, B, n_in, n_out)
    ref = _reference(x, x_kb, w_active, b_active, w_lat1, w_lat2, gates)

    # f32 storage path: tight check vs. reference.
    params_f32 = prepare_params(w_active, b_active, w_lat1, w_lat2, gates,
                                param_dtype=jnp.float32)
    out_f32 = jax.block_until_ready(active_linear(x, x_kb, params_f32))
    assert out_f32.shape == (B, n_out)
    assert jnp.allclose(out_f32, ref, atol=5e-4, rtol=5e-4), "f32 mismatch vs reference"

    # bf16 storage (production default) / f32 accumulation path.
    params_bf16 = prepare_params(w_active, b_active, w_lat1, w_lat2, gates)
    out_bf16 = jax.block_until_ready(
        active_linear(x, x_kb, params_bf16, out_dtype=jnp.float32))
    assert out_bf16.shape == (B, n_out)
    assert jnp.allclose(out_bf16, ref, atol=1.5e-1, rtol=1e-1), "bf16 mismatch vs reference"

    # Case 2: non-square shapes with multiple output-column tiles (exercises the
    # staged-h reuse across j and the resident single-buffered W1).
    B2, n_in2, n_out2 = 40, 96, 384
    x2, x_kb2, w_a2, b_a2, w_l12, w_l22, g2 = _make_case(k1, B2, n_in2, n_out2)
    ref2 = _reference(x2, x_kb2, w_a2, b_a2, w_l12, w_l22, g2)
    params2 = prepare_params(w_a2, b_a2, w_l12, w_l22, g2, param_dtype=jnp.float32)
    out2 = jax.block_until_ready(active_linear(x2, x_kb2, params2))
    assert out2.shape == (B2, n_out2)
    assert jnp.allclose(out2, ref2, atol=5e-4, rtol=5e-4), "case-2 mismatch vs reference"

    print("KERNEL_OK")
</pallas_src>

<mosaic_0001>
module attributes {stable_mosaic.version = 11 : i64} {
  func.func @kernel(%arg0: i32, %arg1: i32, %arg2: memref<64x256xf32, #tpu.memory_space<vmem>>, %arg3: memref<64x256xf32, #tpu.memory_space<vmem>>, %arg4: memref<256x256xf32, #tpu.memory_space<vmem>>, %arg5: memref<256x256xf32, #tpu.memory_space<vmem>>, %arg6: memref<256x256xf32, #tpu.memory_space<vmem>>, %arg7: memref<1x256xf32, #tpu.memory_space<vmem>>, %arg8: memref<64x256xf32, #tpu.memory_space<vmem>>, %arg9: memref<64x256xf32, #tpu.memory_space<vmem>>) attributes {dimension_semantics = [#tpu.dimension_semantics<parallel>, #tpu.dimension_semantics<arbitrary>], iteration_bounds = array<i64: 2, 1>, scalar_prefetch = 0 : i64, scratch_operands = 1 : i64, tpu.core_type = #tpu.core_type<tc>, window_params = [{transform_indices = @transform_0, window_bounds = array<i64: 64, 256>}, {transform_indices = @transform_1, window_bounds = array<i64: 64, 256>}, {transform_indices = @transform_2, window_bounds = array<i64: 256, 256>}, {pipeline_mode = #tpu.pipeline_mode<synchronous>, transform_indices = @transform_3, window_bounds = array<i64: 256, 256>}, {transform_indices = @transform_4, window_bounds = array<i64: 256, 256>}, {transform_indices = @transform_5, window_bounds = array<i64: 1, 256>}, {transform_indices = @transform_6, window_bounds = array<i64: 64, 256>}]} {
    %c0_i32 = arith.constant 0 : i32
    %0 = arith.cmpi eq, %arg1, %c0_i32 : i32
    %1 = arith.extui %0 : i1 to i32
    %c0_i32_0 = arith.constant 0 : i32
    %2 = arith.cmpi ne, %1, %c0_i32_0 : i32
    scf.if %2 {
      %c0_14 = arith.constant 0 : index
      %c0_15 = arith.constant 0 : index
      %16 = vector.load %arg3[%c0_14, %c0_15] : memref<64x256xf32, #tpu.memory_space<vmem>>, vector<64x256xf32>
      %c0_16 = arith.constant 0 : index
      %c0_17 = arith.constant 0 : index
      %17 = vector.load %arg5[%c0_16, %c0_17] : memref<256x256xf32, #tpu.memory_space<vmem>>, vector<256x256xf32>
      %cst_18 = arith.constant dense<0.000000e+00> : vector<64x256xf32>
      %18 = tpu.matmul %16, %17, %cst_18 {dimension_numbers = #tpu.dot_dimension_numbers<[1], [0], [0], [1], [0, 0, 1, 1], [], []>} : vector<64x256xf32>, vector<256x256xf32>, vector<64x256xf32> -> vector<64x256xf32>
      %cst_19 = arith.constant 0.000000e+00 : f32
      %19 = vector.broadcast %cst_19 : f32 to vector<64x256xf32>
      %20 = arith.maximumf %18, %19 : vector<64x256xf32>
      %c0_20 = arith.constant 0 : index
      %c0_21 = arith.constant 0 : index
      %21 = vector.load %arg9[%c0_20, %c0_21] : memref<64x256xf32, #tpu.memory_space<vmem>>, vector<64x256xf32>
      tpu.vector_store %arg9[%c0_20, %c0_21], %20 {strides = array<i32>} : memref<64x256xf32, #tpu.memory_space<vmem>>, vector<64x256xf32>,
    } else {
    }
    %c0 = arith.constant 0 : index
    %c0_1 = arith.constant 0 : index
    %3 = vector.load %arg2[%c0, %c0_1] : memref<64x256xf32, #tpu.memory_space<vmem>>, vector<64x256xf32>
    %c0_2 = arith.constant 0 : index
    %c0_3 = arith.constant 0 : index
    %4 = vector.load %arg4[%c0_2, %c0_3] : memref<256x256xf32, #tpu.memory_space<vmem>>, vector<256x256xf32>
    %cst = arith.constant dense<0.000000e+00> : vector<64x256xf32>
    %5 = tpu.matmul %3, %4, %cst {dimension_numbers = #tpu.dot_dimension_numbers<[1], [0], [0], [1], [0, 0, 1, 1], [], []>} : vector<64x256xf32>, vector<256x256xf32>, vector<64x256xf32> -> vector<64x256xf32>
    %c0_4 = arith.constant 0 : index
    %c0_5 = arith.constant 0 : index
    %6 = vector.load %arg9[%c0_4, %c0_5] : memref<64x256xf32, #tpu.memory_space<vmem>>, vector<64x256xf32>
    %c0_6 = arith.constant 0 : index
    %c0_7 = arith.constant 0 : index
    %7 = vector.load %arg6[%c0_6, %c0_7] : memref<256x256xf32, #tpu.memory_space<vmem>>, vector<256x256xf32>
    %cst_8 = arith.constant dense<0.000000e+00> : vector<64x256xf32>
    %8 = tpu.matmul %6, %7, %cst_8 {dimension_numbers = #tpu.dot_dimension_numbers<[1], [0], [0], [1], [0, 0, 1, 1], [], []>} : vector<64x256xf32>, vector<256x256xf32>, vector<64x256xf32> -> vector<64x256xf32>
    %9 = arith.addf %5, %8 : vector<64x256xf32>
    %c0_9 = arith.constant 0 : index
    %c0_10 = arith.constant 0 : index
    %10 = vector.load %arg7[%c0_9, %c0_10] : memref<1x256xf32, #tpu.memory_space<vmem>>, vector<1x256xf32>
    %11 = vector.broadcast %10 : vector<1x256xf32> to vector<64x256xf32>
    %12 = arith.addf %9, %11 : vector<64x256xf32>
    %cst_11 = arith.constant 0.000000e+00 : f32
    %13 = vector.broadcast %cst_11 : f32 to vector<64x256xf32>
    %14 = arith.maximumf %12, %13 : vector<64x256xf32>
    %c0_12 = arith.constant 0 : index
    %c0_13 = arith.constant 0 : index
    %15 = vector.load %arg8[%c0_12, %c0_13] : memref<64x256xf32, #tpu.memory_space<vmem>>, vector<64x256xf32>
    tpu.vector_store %arg8[%c0_12, %c0_13], %14 {strides = array<i32>} : memref<64x256xf32, #tpu.memory_space<vmem>>, vector<64x256xf32>,
    return
  }
  func.func @transform_0(%arg0: i32, %arg1: i32) -> (i32, i32) {
    %c0_i32 = arith.constant 0 : i32
    %c0_i32_0 = arith.constant 0 : i32
    return %arg0, %c0_i32 : i32, i32
  }
  func.func @transform_1(%arg0: i32, %arg1: i32) -> (i32, i32) {
    %c0_i32 = arith.constant 0 : i32
    %c0_i32_0 = arith.constant 0 : i32
    return %arg0, %c0_i32 : i32, i32
  }
  func.func @transform_2(%arg0: i32, %arg1: i32) -> (i32, i32) {
    %c0_i32 = arith.constant 0 : i32
    %c0_i32_0 = arith.constant 0 : i32
    return %c0_i32, %arg1 : i32, i32
  }
  func.func @transform_3(%arg0: i32, %arg1: i32) -> (i32, i32) {
    %c0_i32 = arith.constant 0 : i32
    %c0_i32_0 = arith.constant 0 : i32
    %c0_i32_1 = arith.constant 0 : i32
    return %c0_i32, %c0_i32_0 : i32, i32
  }
  func.func @transform_4(%arg0: i32, %arg1: i32) -> (i32, i32) {
    %c0_i32 = arith.constant 0 : i32
    %c0_i32_0 = arith.constant 0 : i32
    return %c0_i32, %arg1 : i32, i32
  }
  func.func @transform_5(%arg0: i32, %arg1: i32) -> (i32, i32) {
    %c0_i32 = arith.constant 0 : i32
    %c0_i32_0 = arith.constant 0 : i32
    return %c0_i32, %arg1 : i32, i32
  }
  func.func @transform_6(%arg0: i32, %arg1: i32) -> (i32, i32) {
    %c0_i32 = arith.constant 0 : i32
    return %arg0, %arg1 : i32, i32
  }
}

</mosaic_0001>

<llo_original>
// kernel: tpu_custom_call.1
$region0: #{tpu_custom_call.1}
  #allocation0 [shape = 'u32[]', space=smem, size = 0x4, offset = 0x4, fixed_abs, tag = 'smem constant byte address 0x4 - core index']
  #allocation1 [shape = 'u32[144,128]{1,0:T(1,128)}', space=vmem, size = 0x12000, scoped, tag = 'internal scratch']
  #allocation2 [shape = 'f32[64,256]{1,0:T(8,128)}', space=vmem, size = 0x10000, scoped, tag = 'scratch operand']
  %s0 = inlined_call_operand.hbm [shape: f32[128,256], index: 0, kind: input, shape index: {}]
  %s1 = inlined_call_operand.hbm [shape: f32[128,256], index: 1, kind: input, shape index: {}]
  %s2 = inlined_call_operand.hbm [shape: f32[256,256], index: 2, kind: input, shape index: {}]
  %s3 = inlined_call_operand.hbm [shape: f32[256,256], index: 3, kind: input, shape index: {}]
  %s4 = inlined_call_operand.hbm [shape: f32[256,256], index: 4, kind: input, shape index: {}]
  %s5 = inlined_call_operand.vmem [shape: f32[1,256], index: 5, kind: input, shape index: {}]
  %s6 = inlined_call_operand.hbm [shape: f32[128,256], index: 6, kind: output, shape index: {}]
  %s7 = sld [smem:[#allocation0]]
  $region81: #{tpu_custom_call.1} parent=0
    _
  %s9 = ssub.s32 1, %s7
  %s10 = scalar_select 0, %s9, %s7
  $region1: #{tpu_custom_call.1} parent=0
    #allocation3 [shape = 'u8[131072]{0}', space=vmem, size = 0x20000, scoped, tag = 'input window, operand 0']
    #allocation4 [shape = 's32[2]{0}', space=sflag, size = 0x8, scoped, tag = 'scoped memory for tpu_custom_call.1']
    #allocation5 [shape = 's32[2]{0}', space=sflag, size = 0x8, scoped, tag = 'scoped memory for tpu_custom_call.1']
    #allocation6 [shape = 'u8[131072]{0}', space=vmem, size = 0x20000, scoped, tag = 'input window, operand 1']
    #allocation7 [shape = 's32[2]{0}', space=sflag, size = 0x8, scoped, tag = 'scoped memory for tpu_custom_call.1']
    #allocation8 [shape = 'u8[262144]{0}', space=vmem, size = 0x40000, scoped, tag = 'input window, operand 2, single buffered']
    #allocation9 [shape = 'u8[262144]{0}', space=vmem, size = 0x40000, scoped, tag = 'input window, operand 3, single buffered']
    #allocation10 [shape = 's32[1]{0}', space=sflag, size = 0x4, scoped, tag = 'scoped memory for tpu_custom_call.1']
    #allocation11 [shape = 'u8[262144]{0}', space=vmem, size = 0x40000, scoped, tag = 'input window, operand 4, single buffered']
    #allocation12 [shape = 'u8[131072]{0}', space=vmem, size = 0x20000, scoped, tag = 'output window, operand 0']
    %11 = vsyncpa [#allocation4], 0
    %s12 = scalar_lea.sflag [#allocation4], 1
    %13 = vsyncpa %s12, 0
    %14 = vsyncpa [#allocation7], 0
    %s15 = scalar_lea.sflag [#allocation7], 1
    %16 = vsyncpa %s15, 0
    %17 = vsyncpa [#allocation10], 0
    %18 = vsyncpa [#allocation5], 0
    %s19 = scalar_lea.sflag [#allocation5], 1
    %20 = vsyncpa %s19, 0
    loop: start=0, step=1, limit=4
    $region2: #{tpu_custom_call.1} parent=1 // loop_pre_header
      _
    $region3: #{tpu_custom_call.1} parent=1 // loop_header
      %s22 = sphi 0, %s26
      %p23 = scmp.ge.s32.totalorder %s22, 4
      %s29 = sphi 0, %s41
      %s30 = sphi 0, %s37
      %s31 = sphi 0, %s29
      %s32 = sphi 0, %s30
      %s33 = sphi 0, %s31
      %s34 = sphi 0, %s32
      %s44 = sphi 0, %s46
      %s47 = sphi 0, %s44
      %s48 = sphi 0, %s47
      %s64 = sphi 0, %s48
      %s70 = sphi 0, %s72
      %s73 = sphi 0, %s70
      %s74 = sphi 0, %s73
      %s90 = sphi 0, %s74
      %s96 = sphi 0, %s98
      %s99 = sphi 0, %s96
      %s100 = sphi 0, %s99
      %s116 = sphi 0, %s100
      %s120 = sphi 0, %s120
      %s122 = sphi 0, %s120
      %s123 = sphi 0, %s122
      %s137 = sphi 0, %s123
      %s143 = sphi 0, %s145
      %s146 = sphi 0, %s143
      %s147 = sphi 0, %s146
      %s163 = sphi 0, %s147
      %s169 = sphi 0, %s171
      %s172 = sphi 0, %s169
      %s173 = sphi 0, %s172
      %s189 = sphi 0, %s173
      %s197 = sphi 0, %s199
      %s200 = sphi 0, %s197
      %s201 = sphi 0, %s200
      %s217 = sphi 0, %s201
    $region4: #{tpu_custom_call.1} parent=1 // loop_header_branch
      %25 = sbr.rel (%p23) target = $region8
    $region5: #{tpu_custom_call.1} parent=1 // loop_body
      %s27 = ssub.s32 %s22, 1
      %s28 = ssub.s32 %s22, 2
      %s35 = sadd.s32 1, %s30
      %p36 = scmp.ge.s32.totalorder %s35, 1
      %s37 = scalar_select %p36, 0, %s35
      %s38 = sadd.s32 1, %s29
      %s39 = scalar_select %p36, %s38, %s29
      %p40 = scmp.ge.s32.totalorder %s39, 2
      %s41 = scalar_select %p40, 0, %s39
      %s42 = ssub.s32 %s29, %s41
      %p43 = scmp.eq.s32.totalorder %s42, 0
      %s45 = sadd.s32 %s44, 1
      %s46 = scalar_select %p43, %s44, %s45
      %p49 = pneg %p43
      %p50 = scmp.eq.s32.totalorder %s22, 1
      %p51 = por %p49, %p50
      %p52 = scmp.ne.s32.totalorder %s44, %s47
      %p53 = scmp.eq.s32.totalorder %s22, 0
      %p54 = por %p52, %p53
      %p55 = scmp.ne.s32.totalorder %s44, %s47
      %p56 = scmp.eq.s32.totalorder %s27, 1
      %p57 = por %p55, %p56
      %p58 = scmp.ne.s32.totalorder %s47, %s48
      %p59 = scmp.eq.s32.totalorder %s27, 0
      %p60 = por %p58, %p59
      %p61 = scmp.ne.s32.totalorder %s47, %s48
      %p62 = scmp.eq.s32.totalorder %s28, 1
      %p63 = por %p61, %p62
      %p65 = scmp.ne.s32.totalorder %s48, %s64
      %p66 = scmp.eq.s32.totalorder %s28, 0
      %p67 = por %p65, %p66
      %s68 = ssub.s32 %s29, %s41
      %p69 = scmp.eq.s32.totalorder %s68, 0
      %s71 = sadd.s32 %s70, 1
      %s72 = scalar_select %p69, %s70, %s71
      %p75 = pneg %p69
      %p76 = scmp.eq.s32.totalorder %s22, 1
      %p77 = por %p75, %p76
      %p78 = scmp.ne.s32.totalorder %s70, %s73
      %p79 = scmp.eq.s32.totalorder %s22, 0
      %p80 = por %p78, %p79
      %p81 = scmp.ne.s32.totalorder %s70, %s73
      %p82 = scmp.eq.s32.totalorder %s27, 1
      %p83 = por %p81, %p82
      %p84 = scmp.ne.s32.totalorder %s73, %s74
      %p85 = scmp.eq.s32.totalorder %s27, 0
      %p86 = por %p84, %p85
      %p87 = scmp.ne.s32.totalorder %s73, %s74
      %p88 = scmp.eq.s32.totalorder %s28, 1
      %p89 = por %p87, %p88
      %p91 = scmp.ne.s32.totalorder %s74, %s90
      %p92 = scmp.eq.s32.totalorder %s28, 0
      %p93 = por %p91, %p92
      %s94 = ssub.s32 %s30, %s37
      %p95 = scmp.eq.s32.totalorder %s94, 0
      %s97 = sadd.s32 %s96, 1
      %s98 = scalar_select %p95, %s96, %s97
      %p101 = pneg %p95
      %p102 = scmp.eq.s32.totalorder %s22, 1
      %p103 = por %p101, %p102
      %p104 = scmp.ne.s32.totalorder %s96, %s99
      %p105 = scmp.eq.s32.totalorder %s22, 0
      %p106 = por %p104, %p105
      %p107 = scmp.ne.s32.totalorder %s96, %s99
      %p108 = scmp.eq.s32.totalorder %s27, 1
      %p109 = por %p107, %p108
      %p110 = scmp.ne.s32.totalorder %s99, %s100
      %p111 = scmp.eq.s32.totalorder %s27, 0
      %p112 = por %p110, %p111
      %p113 = scmp.ne.s32.totalorder %s99, %s100
      %p114 = scmp.eq.s32.totalorder %s28, 1
      %p115 = por %p113, %p114
      %p117 = scmp.ne.s32.totalorder %s100, %s116
      %p118 = scmp.eq.s32.totalorder %s28, 0
      %p119 = por %p117, %p118
      %s121 = sadd.s32 %s120, 1
      %p124 = scmp.eq.s32.totalorder %s22, 1
      %p125 = scmp.ne.s32.totalorder %s120, %s122
      %p126 = scmp.eq.s32.totalorder %s22, 0
      %p127 = por %p125, %p126
      %p128 = scmp.ne.s32.totalorder %s120, %s122
      %p129 = scmp.eq.s32.totalorder %s27, 1
      %p130 = por %p128, %p129
      %p131 = scmp.ne.s32.totalorder %s122, %s123
      %p132 = scmp.eq.s32.totalorder %s27, 0
      %p133 = por %p131, %p132
      %p134 = scmp.ne.s32.totalorder %s122, %s123
      %p135 = scmp.eq.s32.totalorder %s28, 1
      %p136 = por %p134, %p135
      %p138 = scmp.ne.s32.totalorder %s123, %s137
      %p139 = scmp.eq.s32.totalorder %s28, 0
      %p140 = por %p138, %p139
      %s141 = ssub.s32 %s30, %s37
      %p142 = scmp.eq.s32.totalorder %s141, 0
      %s144 = sadd.s32 %s143, 1
      %s145 = scalar_select %p142, %s143, %s144
      %p148 = pneg %p142
      %p149 = scmp.eq.s32.totalorder %s22, 1
      %p150 = por %p148, %p149
      %p151 = scmp.ne.s32.totalorder %s143, %s146
      %p152 = scmp.eq.s32.totalorder %s22, 0
      %p153 = por %p151, %p152
      %p154 = scmp.ne.s32.totalorder %s143, %s146
      %p155 = scmp.eq.s32.totalorder %s27, 1
      %p156 = por %p154, %p155
      %p157 = scmp.ne.s32.totalorder %s146, %s147
      %p158 = scmp.eq.s32.totalorder %s27, 0
      %p159 = por %p157, %p158
      %p160 = scmp.ne.s32.totalorder %s146, %s147
      %p161 = scmp.eq.s32.totalorder %s28, 1
      %p162 = por %p160, %p161
      %p164 = scmp.ne.s32.totalorder %s147, %s163
      %p165 = scmp.eq.s32.totalorder %s28, 0
      %p166 = por %p164, %p165
      %s167 = ssub.s32 %s30, %s37
      %p168 = scmp.eq.s32.totalorder %s167, 0
      %s170 = sadd.s32 %s169, 1
      %s171 = scalar_select %p168, %s169, %s170
      %p174 = pneg %p168
      %p175 = scmp.eq.s32.totalorder %s22, 1
      %p176 = por %p174, %p175
      %p177 = scmp.ne.s32.totalorder %s169, %s172
      %p178 = scmp.eq.s32.totalorder %s22, 0
      %p179 = por %p177, %p178
      %p180 = scmp.ne.s32.totalorder %s169, %s172
      %p181 = scmp.eq.s32.totalorder %s27, 1
      %p182 = por %p180, %p181
      %p183 = scmp.ne.s32.totalorder %s172, %s173
      %p184 = scmp.eq.s32.totalorder %s27, 0
      %p185 = por %p183, %p184
      %p186 = scmp.ne.s32.totalorder %s172, %s173
      %p187 = scmp.eq.s32.totalorder %s28, 1
      %p188 = por %p186, %p187
      %p190 = scmp.ne.s32.totalorder %s173, %s189
      %p191 = scmp.eq.s32.totalorder %s28, 0
      %p192 = por %p190, %p191
      %s193 = ssub.s32 %s29, %s41
      %s194 = ssub.s32 %s30, %s37
      %s195 = sor.u32 %s193, %s194
      %p196 = scmp.eq.s32.totalorder %s195, 0
      %s198 = sadd.s32 %s197, 1
      %s199 = scalar_select %p196, %s197, %s198
      %p202 = pneg %p196
      %p203 = scmp.eq.s32.totalorder %s22, 1
      %p204 = por %p202, %p203
      %p205 = scmp.ne.s32.totalorder %s197, %s200
      %p206 = scmp.eq.s32.totalorder %s22, 0
      %p207 = por %p205, %p206
      %p208 = scmp.ne.s32.totalorder %s197, %s200
      %p209 = scmp.eq.s32.totalorder %s27, 1
      %p210 = por %p208, %p209
      %p211 = scmp.ne.s32.totalorder %s200, %s201
      %p212 = scmp.eq.s32.totalorder %s27, 0
      %p213 = por %p211, %p212
      %p214 = scmp.ne.s32.totalorder %s200, %s201
      %p215 = scmp.eq.s32.totalorder %s28, 1
      %p216 = por %p214, %p215
      %p218 = scmp.ne.s32.totalorder %s201, %s217
      %p219 = scmp.eq.s32.totalorder %s28, 0
      %p220 = por %p218, %p219
      %p221 = scmp.le.s32.totalorder 1, %s22
      %p222 = scmp.lt.s32.totalorder %s22, 3
      %p223 = pnand %p221, %p222
      %p224 = pneg %p223
      // Predicated region
      $region9: #{tpu_custom_call.1} parent=5 // pred_check
        _
      $region10: #{tpu_custom_call.1} parent=5 // pred_check_branch
        %226 = sbr.rel (%p223) target = $region12
      $region11: #{tpu_custom_call.1} parent=5 // pred_region
        %s227 = ssub.s32 %s22, 1
        // Predicated region
        $region13: #{tpu_custom_call.1} parent=11 // pred_check
          %p228 = pneg %p112
        $region14: #{tpu_custom_call.1} parent=11 // pred_check_branch
          %230 = sbr.rel (%p228) target = $region16
        $region15: #{tpu_custom_call.1} parent=11 // pred_region
          %s231 = smul.u32 2, %s32
          %s233 = ssub.s32 8192, 8192
          %234 = vsyncadd [#allocation7], %s233
          %s235 = smul.addr %s231, 128
          %s236 = scalar_lea.hbm %s2, %s235
          %s237 = sshll.u32 [#allocation8], 4
          %s238 = int_to_ptr.vmem [resolvable:$true] %s237
          %243 = dma.hbm_to_vmem [thread:$0]  %s236, 8192, %s238, [#allocation7], 256, 256, 16
        $region16: #{tpu_custom_call.1} parent=11 // pred_fallthru
          _
        // Predicated region
        $region17: #{tpu_custom_call.1} parent=11 // pred_check
          %p244 = pneg %p133
        $region18: #{tpu_custom_call.1} parent=11 // pred_check_branch
          %246 = sbr.rel (%p244) target = $region20
        $region19: #{tpu_custom_call.1} parent=11 // pred_region
          %s248 = ssub.s32 8192, 8192
          %249 = vsyncadd [#allocation10], %s248
          %s250 = sshll.u32 [#allocation9], 4
          %s251 = int_to_ptr.vmem [resolvable:$true] %s250
          %256 = dma.hbm_to_vmem [thread:$0]  %s3, 8192, %s251, [#allocation10], 256, 256, 16
        $region20: #{tpu_custom_call.1} parent=11 // pred_fallthru
          _
        // Predicated region
        $region21: #{tpu_custom_call.1} parent=11 // pred_check
          %p257 = pneg %p159
        $region22: #{tpu_custom_call.1} parent=11 // pred_check_branch
          %259 = sbr.rel (%p257) target = $region24
        $region23: #{tpu_custom_call.1} parent=11 // pred_region
          %s260 = smul.u32 2, %s32
          %s262 = ssub.s32 8192, 8192
          %263 = vsyncadd [#allocation10], %s262
          %s264 = smul.addr %s260, 128
          %s265 = scalar_lea.hbm %s4, %s264
          %s266 = sshll.u32 [#allocation11], 4
          %s267 = int_to_ptr.vmem [resolvable:$true] %s266
          %272 = dma.hbm_to_vmem [thread:$0]  %s265, 8192, %s267, [#allocation10], 256, 256, 16
        $region24: #{tpu_custom_call.1} parent=11 // pred_fallthru
          _
        // Predicated region
        $region25: #{tpu_custom_call.1} parent=11 // pred_check
          %p273 = pneg %p185
        $region26: #{tpu_custom_call.1} parent=11 // pred_check_branch
          %275 = sbr.rel (%p273) target = $region28
        $region27: #{tpu_custom_call.1} parent=11 // pred_region
          %s276 = smul.u32 2, %s32
          %p277 = scmp.lt.s32.totalorder %s276, 1
          %s278 = scalar_select %p277, %s276, 1
          %s279 = scalar_lea.vmem %s5, %s278
          %s280 = smul.u32 2, %s32
        $region28: #{tpu_custom_call.1} parent=11 // pred_fallthru
          _
      $region12: #{tpu_custom_call.1} parent=5 // pred_fallthru
        _
      %p281 = scmp.lt.s32.totalorder %s22, 2
      // Predicated region
      $region29: #{tpu_custom_call.1} parent=5 // pred_check
        %p282 = pneg %p281
      $region30: #{tpu_custom_call.1} parent=5 // pred_check_branch
        %284 = sbr.rel (%p282) target = $region32
      $region31: #{tpu_custom_call.1} parent=5 // pred_region
        // Predicated region
        $region33: #{tpu_custom_call.1} parent=31 // pred_check
          %p285 = pneg %p54
        $region34: #{tpu_custom_call.1} parent=31 // pred_check_branch
          %287 = sbr.rel (%p285) target = $region36
        $region35: #{tpu_custom_call.1} parent=31 // pred_region
          %s288 = sand.u32 %s44, 1
          %s289 = scalar_lea.sflag [#allocation4], %s288
          %s290 = sand.u32 %s44, 1
          %s291 = smul.addr %s290, 128
          %s292 = scalar_lea.vmem [#allocation3], %s291
          %s293 = smul.u32 8, %s29
          %s295 = ssub.s32 2048, 2048
          %296 = vsyncadd %s289, %s295
          %s297 = smul.addr %s293, 2
          %s298 = smul.addr %s297, 128
          %s299 = scalar_lea.hbm %s0, %s298
          %s300 = sshll.u32 %s292, 4
          %s301 = int_to_ptr.vmem [resolvable:$true] %s300
          %306 = dma.hbm_to_vmem [thread:$0]  %s299, 2048, %s301, %s289, 256, 256, 16
        $region36: #{tpu_custom_call.1} parent=31 // pred_fallthru
          _
        // Predicated region
        $region37: #{tpu_custom_call.1} parent=31 // pred_check
          %p307 = pneg %p80
        $region38: #{tpu_custom_call.1} parent=31 // pred_check_branch
          %309 = sbr.rel (%p307) target = $region40
        $region39: #{tpu_custom_call.1} parent=31 // pred_region
          %s310 = sand.u32 %s22, 1
          %s311 = scalar_lea.sflag [#allocation7], %s310
          %s312 = sand.u32 %s70, 1
          %s313 = smul.addr %s312, 128
          %s314 = scalar_lea.vmem [#allocation6], %s313
          %s315 = smul.u32 8, %s29
          %s317 = ssub.s32 2048, 2048
          %318 = vsyncadd %s311, %s317
          %s319 = smul.addr %s315, 2
          %s320 = smul.addr %s319, 128
          %s321 = scalar_lea.hbm %s1, %s320
          %s322 = sshll.u32 %s314, 4
          %s323 = int_to_ptr.vmem [resolvable:$true] %s322
          %328 = dma.hbm_to_vmem [thread:$0]  %s321, 2048, %s323, %s311, 256, 256, 16
        $region40: #{tpu_custom_call.1} parent=31 // pred_fallthru
          _
      $region32: #{tpu_custom_call.1} parent=5 // pred_fallthru
        _
      %p329 = scmp.le.s32.totalorder 1, %s22
      %p330 = scmp.lt.s32.totalorder %s22, 3
      %p331 = pnand %p329, %p330
      %p332 = pneg %p331
      // Predicated region
      $region41: #{tpu_custom_call.1} parent=5 // pred_check
        _
      $region42: #{tpu_custom_call.1} parent=5 // pred_check_branch
        %334 = sbr.rel (%p331) target = $region44
      $region43: #{tpu_custom_call.1} parent=5 // pred_region
        %s335 = ssub.s32 %s22, 1
        %s336 = sand.u32 %s47, 1
        %s337 = scalar_lea.sflag [#allocation4], %s336
        %s338 = sand.u32 %s47, 1
        %s339 = smul.addr %s338, 128
        %s340 = scalar_lea.vmem [#allocation3], %s339
        // Predicated region
        $region45: #{tpu_custom_call.1} parent=43 // pred_check
          %p341 = pneg %p60
        $region46: #{tpu_custom_call.1} parent=43 // pred_check_branch
          %343 = sbr.rel (%p341) target = $region48
        $region47: #{tpu_custom_call.1} parent=43 // pred_region
          %344 = dma.done %s337, 2048
        $region48: #{tpu_custom_call.1} parent=43 // pred_fallthru
          _
        %s345 = sand.u32 %s27, 1
        %s346 = scalar_lea.sflag [#allocation7], %s345
        %s347 = sand.u32 %s73, 1
        %s348 = smul.addr %s347, 128
        %s349 = scalar_lea.vmem [#allocation6], %s348
        // Predicated region
        $region49: #{tpu_custom_call.1} parent=43 // pred_check
          %p350 = pneg %p86
        $region50: #{tpu_custom_call.1} parent=43 // pred_check_branch
          %352 = sbr.rel (%p350) target = $region52
        $region51: #{tpu_custom_call.1} parent=43 // pred_region
          %353 = dma.done %s346, 2048
        $region52: #{tpu_custom_call.1} parent=43 // pred_fallthru
          _
        // Predicated region
        $region53: #{tpu_custom_call.1} parent=43 // pred_check
          %p354 = pneg %p112
        $region54: #{tpu_custom_call.1} parent=43 // pred_check_branch
          %356 = sbr.rel (%p354) target = $region56
        $region55: #{tpu_custom_call.1} parent=43 // pred_region
          %357 = dma.done [#allocation7], 8192
        $region56: #{tpu_custom_call.1} parent=43 // pred_fallthru
          _
        // Predicated region
        $region57: #{tpu_custom_call.1} parent=43 // pred_check
          %p358 = pneg %p133
        $region58: #{tpu_custom_call.1} parent=43 // pred_check_branch
          %360 = sbr.rel (%p358) target = $region60
        $region59: #{tpu_custom_call.1} parent=43 // pred_region
          %361 = dma.done [#allocation10], 8192
        $region60: #{tpu_custom_call.1} parent=43 // pred_fallthru
          _
        // Predicated region
        $region61: #{tpu_custom_call.1} parent=43 // pred_check
          %p362 = pneg %p159
        $region62: #{tpu_custom_call.1} parent=43 // pred_check_branch
          %364 = sbr.rel (%p362) target = $region64
        $region63: #{tpu_custom_call.1} parent=43 // pred_region
          %365 = dma.done [#allocation10], 8192
        $region64: #{tpu_custom_call.1} parent=43 // pred_fallthru
          _
        %s366 = sand.u32 %s47, 1
        %s367 = scalar_lea.sflag [#allocation4], %s366
        %s368 = sand.u32 %s47, 1
        %s369 = smul.addr %s368, 128
        %s370 = scalar_lea.vmem [#allocation3], %s369
        %p371 = pneg %p60
        %p372 = pneg %p57
        %s373 = sand.u32 %s27, 1
        %s374 = scalar_lea.sflag [#allocation7], %s373
        %s375 = sand.u32 %s73, 1
        %s376 = smul.addr %s375, 128
        %s377 = scalar_lea.vmem [#allocation6], %s376
        %p378 = pneg %p86
        %p379 = pneg %p83
        %p380 = pneg %p112
        %p381 = pneg %p109
        %p382 = pneg %p133
        %p383 = pneg %p130
        %p384 = pneg %p159
        %p385 = pneg %p156
        %s386 = smul.u32 2, %s32
        %p387 = scmp.lt.s32.totalorder %s386, 1
        %s388 = scalar_select %p387, %s386, 1
        %s389 = scalar_lea.vmem %s5, %s388
        %p390 = pneg %p185
        %p391 = pneg %p182
        %p392 = pneg %p213
        %p393 = pneg %p210
        %s394 = sand.u32 %s200, 1
        %s395 = scalar_lea.sflag [#allocation5], %s394
        %s396 = sand.u32 %s200, 1
        %s397 = smul.addr %s396, 128
        %s398 = scalar_lea.vmem [#allocation12], %s397
        %s399 = smul.u32 8, %s31
        %s400 = smul.u32 8, %s31
        %s401 = smul.u32 2, %s32
        %s402 = smul.u32 2, %s32
        %s403 = smul.u32 2, %s32
        %p404 = scmp.lt.s32.totalorder %s403, 1
        %s405 = scalar_select %p404, %s403, 1
        %s406 = scalar_lea.vmem %s5, %s405
        %s407 = smul.u32 2, %s32
        %s408 = smul.u32 8, %s31
        %s409 = smul.u32 2, %s32
        %p410 = scmp.eq.s32.totalorder %s32, 0
        // Predicated region
        $region65: #{tpu_custom_call.1} parent=43 // pred_check
          %p411 = pneg %p410
        $region66: #{tpu_custom_call.1} parent=43 // pred_check_branch
          %413 = sbr.rel (%p411) target = $region68
        $region67: #{tpu_custom_call.1} parent=43 // pred_region
          %v414 = vld [vmem:[%s349] sm:$0xff]
          %v415 = vld [vmem:[%s349 + $0x8] sm:$0xff]
          %v416 = vld [vmem:[%s349 + $0x10] sm:$0xff]
          %v417 = vld [vmem:[%s349 + $0x18] sm:$0xff]
          %v418 = vld [vmem:[%s349 + $0x20] sm:$0xff]
          %v419 = vld [vmem:[%s349 + $0x28] sm:$0xff]
          %v420 = vld [vmem:[%s349 + $0x30] sm:$0xff]
          %v421 = vld [vmem:[%s349 + $0x38] sm:$0xff]
          %v422 = vld [vmem:[%s349 + $0x40] sm:$0xff]
          %v423 = vld [vmem:[%s349 + $0x48] sm:$0xff]
          %v424 = vld [vmem:[%s349 + $0x50] sm:$0xff]
          %v425 = vld [vmem:[%s349 + $0x58] sm:$0xff]
          %v426 = vld [vmem:[%s349 + $0x60] sm:$0xff]
          %v427 = vld [vmem:[%s349 + $0x68] sm:$0xff]
          %v428 = vld [vmem:[%s349 + $0x70] sm:$0xff]
          %v429 = vld [vmem:[%s349 + $0x78] sm:$0xff]
          %v430 = vld [vmem:[#allocation9] sm:$0xff]
          %v431 = vld [vmem:[#allocation9 + $0x8] sm:$0xff]
          %v432 = vld [vmem:[#allocation9 + $0x10] sm:$0xff]
          %v433 = vld [vmem:[#allocation9 + $0x18] sm:$0xff]
          %v434 = vld [vmem:[#allocation9 + $0x20] sm:$0xff]
          %v435 = vld [vmem:[#allocation9 + $0x28] sm:$0xff]
          %v436 = vld [vmem:[#allocation9 + $0x30] sm:$0xff]
          %v437 = vld [vmem:[#allocation9 + $0x38] sm:$0xff]
          %v438 = vld [vmem:[#allocation9 + $0x40] sm:$0xff]
          %v439 = vld [vmem:[#allocation9 + $0x48] sm:$0xff]
          %v440 = vld [vmem:[#allocation9 + $0x50] sm:$0xff]
          %v441 = vld [vmem:[#allocation9 + $0x58] sm:$0xff]
          %v442 = vld [vmem:[#allocation9 + $0x60] sm:$0xff]
          %v443 = vld [vmem:[#allocation9 + $0x68] sm:$0xff]
          %v444 = vld [vmem:[#allocation9 + $0x70] sm:$0xff]
          %v445 = vld [vmem:[#allocation9 + $0x78] sm:$0xff]
          %v446 = vld [vmem:[#allocation9 + $0x80] sm:$0xff]
          %v447 = vld [vmem:[#allocation9 + $0x88] sm:$0xff]
          %v448 = vld [vmem:[#allocation9 + $0x90] sm:$0xff]
          %v449 = vld [vmem:[#allocation9 + $0x98] sm:$0xff]
          %v450 = vld [vmem:[#allocation9 + $0xa0] sm:$0xff]
          %v451 = vld [vmem:[#allocation9 + $0xa8] sm:$0xff]
          %v452 = vld [vmem:[#allocation9 + $0xb0] sm:$0xff]
          %v453 = vld [vmem:[#allocation9 + $0xb8] sm:$0xff]
          %v454 = vld [vmem:[#allocation9 + $0xc0] sm:$0xff]
          %v455 = vld [vmem:[#allocation9 + $0xc8] sm:$0xff]
          %v456 = vld [vmem:[#allocation9 + $0xd0] sm:$0xff]
          %v457 = vld [vmem:[#allocation9 + $0xd8] sm:$0xff]
          %v458 = vld [vmem:[#allocation9 + $0xe0] sm:$0xff]
          %v459 = vld [vmem:[#allocation9 + $0xe8] sm:$0xff]
          %v460 = vld [vmem:[#allocation9 + $0xf0] sm:$0xff]
          %v461 = vld [vmem:[#allocation9 + $0xf8] sm:$0xff]
          %v462 = vld [vmem:[#allocation9 + $0x100] sm:$0xff]
          %v463 = vld [vmem:[#allocation9 + $0x108] sm:$0xff]
          %v464 = vld [vmem:[#allocation9 + $0x110] sm:$0xff]
          %v465 = vld [vmem:[#allocation9 + $0x118] sm:$0xff]
          %v466 = vld [vmem:[#allocation9 + $0x120] sm:$0xff]
          %v467 = vld [vmem:[#allocation9 + $0x128] sm:$0xff]
          %v468 = vld [vmem:[#allocation9 + $0x130] sm:$0xff]
          %v469 = vld [vmem:[#allocation9 + $0x138] sm:$0xff]
          %v470 = vld [vmem:[#allocation9 + $0x140] sm:$0xff]
          %v471 = vld [vmem:[#allocation9 + $0x148] sm:$0xff]
          %v472 = vld [vmem:[#allocation9 + $0x150] sm:$0xff]
          %v473 = vld [vmem:[#allocation9 + $0x158] sm:$0xff]
          %v474 = vld [vmem:[#allocation9 + $0x160] sm:$0xff]
          %v475 = vld [vmem:[#allocation9 + $0x168] sm:$0xff]
          %v476 = vld [vmem:[#allocation9 + $0x170] sm:$0xff]
          %v477 = vld [vmem:[#allocation9 + $0x178] sm:$0xff]
          %v478 = vld [vmem:[#allocation9 + $0x180] sm:$0xff]
          %v479 = vld [vmem:[#allocation9 + $0x188] sm:$0xff]
          %v480 = vld [vmem:[#allocation9 + $0x190] sm:$0xff]
          %v481 = vld [vmem:[#allocation9 + $0x198] sm:$0xff]
          %v482 = vld [vmem:[#allocation9 + $0x1a0] sm:$0xff]
          %v483 = vld [vmem:[#allocation9 + $0x1a8] sm:$0xff]
          %v484 = vld [vmem:[#allocation9 + $0x1b0] sm:$0xff]
          %v485 = vld [vmem:[#allocation9 + $0x1b8] sm:$0xff]
          %v486 = vld [vmem:[#allocation9 + $0x1c0] sm:$0xff]
          %v487 = vld [vmem:[#allocation9 + $0x1c8] sm:$0xff]
          %v488 = vld [vmem:[#allocation9 + $0x1d0] sm:$0xff]
          %v489 = vld [vmem:[#allocation9 + $0x1d8] sm:$0xff]
          %v490 = vld [vmem:[#allocation9 + $0x1e0] sm:$0xff]
          %v491 = vld [vmem:[#allocation9 + $0x1e8] sm:$0xff]
          %v492 = vld [vmem:[#allocation9 + $0x1f0] sm:$0xff]
          %v493 = vld [vmem:[#allocation9 + $0x1f8] sm:$0xff]
          %494 = vmatprep.subr.mxu0 %v431
          %495 = vmatpush1.msra.mxu0 %v430
          %496 = vmatprep.subr.mxu0 %v433
          %497 = vmatpush1.msra.mxu0 %v432
          %498 = vmatprep.subr.mxu0 %v435
          %499 = vmatpush1.msra.mxu0 %v434
          %500 = vmatprep.subr.mxu0 %v437
          %501 = vmatpush1.msra.mxu0 %v436
          %502 = vmatprep.subr.mxu0 %v439
          %503 = vmatpush1.msra.mxu0 %v438
          %504 = vmatprep.subr.mxu0 %v441
          %505 = vmatpush1.msra.mxu0 %v440
          %506 = vmatprep.subr.mxu0 %v443
          %507 = vmatpush1.msra.mxu0 %v442
          %508 = vmatprep.subr.mxu0 %v445
          %509 = vmatpush1.msra.mxu0 %v444
          %510 = vmatprep.subr.mxu0 %v447
          %511 = vmatpush1.msra.mxu0 %v446
          %512 = vmatprep.subr.mxu0 %v449
          %513 = vmatpush1.msra.mxu0 %v448
          %514 = vmatprep.subr.mxu0 %v451
          %515 = vmatpush1.msra.mxu0 %v450
          %516 = vmatprep.subr.mxu0 %v453
          %517 = vmatpush1.msra.mxu0 %v452
          %518 = vmatprep.subr.mxu0 %v455
          %519 = vmatpush1.msra.mxu0 %v454
          %520 = vmatprep.subr.mxu0 %v457
          %521 = vmatpush1.msra.mxu0 %v456
          %522 = vmatprep.subr.mxu0 %v459
          %523 = vmatpush1.msra.mxu0 %v458
          %524 = vmatprep.subr.mxu0 %v461
          %525 = vmatpush1.msra.mxu0 %v460
          %526 = vmatprep.subr.mxu0 %v463
          %527 = vmatpush1.msra.mxu0 %v462
          %528 = vmatprep.subr.mxu0 %v465
          %529 = vmatpush1.msra.mxu0 %v464
          %530 = vmatprep.subr.mxu0 %v467
          %531 = vmatpush1.msra.mxu0 %v466
          %532 = vmatprep.subr.mxu0 %v469
          %533 = vmatpush1.msra.mxu0 %v468
          %534 = vmatprep.subr.mxu0 %v471
          %535 = vmatpush1.msra.mxu0 %v470
          %536 = vmatprep.subr.mxu0 %v473
          %537 = vmatpush1.msra.mxu0 %v472
          %538 = vmatprep.subr.mxu0 %v475
          %539 = vmatpush1.msra.mxu0 %v474
          %540 = vmatprep.subr.mxu0 %v477
          %541 = vmatpush1.msra.mxu0 %v476
          %542 = vmatprep.subr.mxu0 %v479
          %543 = vmatpush1.msra.mxu0 %v478
          %544 = vmatprep.subr.mxu0 %v481
          %545 = vmatpush1.msra.mxu0 %v480
          %546 = vmatprep.subr.mxu0 %v483
          %547 = vmatpush1.msra.mxu0 %v482
          %548 = vmatprep.subr.mxu0 %v485
          %549 = vmatpush1.msra.mxu0 %v484
          %550 = vmatprep.subr.mxu0 %v487
          %551 = vmatpush1.msra.mxu0 %v486
          %552 = vmatprep.subr.mxu0 %v489
          %553 = vmatpush1.msra.mxu0 %v488
          %554 = vmatprep.subr.mxu0 %v491
          %555 = vmatpush1.msra.mxu0 %v490
          %556 = vmatprep.subr.mxu0 %v493
          %557 = vmatpush1.msra.mxu0 %v492
          %558 = vmatprep.mubr.f32.mxu0 %v415
          %559 = vmatmul.mubr.f32.gmra.mrb[0].mxu0 %v414
          %v560 = vpop.f32.mrb[0].mxu0
          %v561 = vadd.f32 0.0, %v560
          %v562 = vpop.f32.mrb[0].mxu0
          %v563 = vadd.f32 0.0, %v562
          %564 = vmatprep.mubr.f32.mxu0 %v417
          %565 = vmatmul.mubr.f32.gmra.mrb[0].mxu0 %v416
          %v566 = vpop.f32.mrb[0].mxu0
          %v567 = vadd.f32 0.0, %v566
          %v568 = vpop.f32.mrb[0].mxu0
          %v569 = vadd.f32 0.0, %v568
          %570 = vmatprep.mubr.f32.mxu0 %v419
          %571 = vmatmul.mubr.f32.gmra.mrb[0].mxu0 %v418
          %v572 = vpop.f32.mrb[0].mxu0
          %v573 = vadd.f32 0.0, %v572
          %v574 = vpop.f32.mrb[0].mxu0
          %v575 = vadd.f32 0.0, %v574
          %576 = vmatprep.mubr.f32.mxu0 %v421
          %577 = vmatmul.mubr.f32.gmra.mrb[0].mxu0 %v420
          %v578 = vpop.f32.mrb[0].mxu0
          %v579 = vadd.f32 0.0, %v578
          %v580 = vpop.f32.mrb[0].mxu0
          %v581 = vadd.f32 0.0, %v580
          %582 = vmatprep.mubr.f32.mxu0 %v423
          %583 = vmatmul.mubr.f32.gmra.mrb[0].mxu0 %v422
          %v584 = vpop.f32.mrb[0].mxu0
          %v585 = vadd.f32 0.0, %v584
          %v586 = vpop.f32.mrb[0].mxu0
          %v587 = vadd.f32 0.0, %v586
          %588 = vmatprep.mubr.f32.mxu0 %v425
          %589 = vmatmul.mubr.f32.gmra.mrb[0].mxu0 %v424
          %v590 = vpop.f32.mrb[0].mxu0
          %v591 = vadd.f32 0.0, %v590
          %v592 = vpop.f32.mrb[0].mxu0
          %v593 = vadd.f32 0.0, %v592
          %594 = vmatprep.mubr.f32.mxu0 %v427
          %595 = vmatmul.mubr.f32.gmra.mrb[0].mxu0 %v426
          %v596 = vpop.f32.mrb[0].mxu0
          %v597 = vadd.f32 0.0, %v596
          %v598 = vpop.f32.mrb[0].mxu0
          %v599 = vadd.f32 0.0, %v598
          %600 = vmatprep.mubr.f32.mxu0 %v429
          %601 = vmatmul.mubr.f32.gmra.mrb[0].mxu0 %v428
          %v602 = vpop.f32.mrb[0].mxu0
          %v603 = vadd.f32 0.0, %v602
          %v604 = vpop.f32.mrb[0].mxu0
          %v605 = vadd.f32 0.0, %v604
          %606 = vdwg.mxu0
          %v607 = vmax.f32 %v561, 0.0
          %v608 = vmax.f32 %v563, 0.0
          %v609 = vmax.f32 %v567, 0.0
          %v610 = vmax.f32 %v569, 0.0
          %v611 = vmax.f32 %v573, 0.0
          %v612 = vmax.f32 %v575, 0.0
          %v613 = vmax.f32 %v579, 0.0
          %v614 = vmax.f32 %v581, 0.0
          %v615 = vmax.f32 %v585, 0.0
          %v616 = vmax.f32 %v587, 0.0
          %v617 = vmax.f32 %v591, 0.0
          %v618 = vmax.f32 %v593, 0.0
          %v619 = vmax.f32 %v597, 0.0
          %v620 = vmax.f32 %v599, 0.0
          %v621 = vmax.f32 %v603, 0.0
          %v622 = vmax.f32 %v605, 0.0
          %623 = vst [vmem:[#allocation2] sm:$0xff] %v607
          %624 = vst [vmem:[#allocation2 + $0x8] sm:$0xff] %v608
          %625 = vst [vmem:[#allocation2 + $0x10] sm:$0xff] %v609
          %626 = vst [vmem:[#allocation2 + $0x18] sm:$0xff] %v610
          %627 = vst [vmem:[#allocation2 + $0x20] sm:$0xff] %v611
          %628 = vst [vmem:[#allocation2 + $0x28] sm:$0xff] %v612
          %629 = vst [vmem:[#allocation2 + $0x30] sm:$0xff] %v613
          %630 = vst [vmem:[#allocation2 + $0x38] sm:$0xff] %v614
          %631 = vst [vmem:[#allocation2 + $0x40] sm:$0xff] %v615
          %632 = vst [vmem:[#allocation2 + $0x48] sm:$0xff] %v616
          %633 = vst [vmem:[#allocation2 + $0x50] sm:$0xff] %v617
          %634 = vst [vmem:[#allocation2 + $0x58] sm:$0xff] %v618
          %635 = vst [vmem:[#allocation2 + $0x60] sm:$0xff] %v619
          %636 = vst [vmem:[#allocation2 + $0x68] sm:$0xff] %v620
          %637 = vst [vmem:[#allocation2 + $0x70] sm:$0xff] %v621
          %638 = vst [vmem:[#allocation2 + $0x78] sm:$0xff] %v622
        $region68: #{tpu_custom_call.1} parent=43 // pred_fallthru
          _
        %v639 = vld [vmem:[%s340] sm:$0xff]
        %v640 = vld [vmem:[%s340 + $0x8] sm:$0xff]
        %v641 = vld [vmem:[%s340 + $0x10] sm:$0xff]
        %v642 = vld [vmem:[%s340 + $0x18] sm:$0xff]
        %v643 = vld [vmem:[%s340 + $0x20] sm:$0xff]
        %v644 = vld [vmem:[%s340 + $0x28] sm:$0xff]
        %v645 = vld [vmem:[%s340 + $0x30] sm:$0xff]
        %v646 = vld [vmem:[%s340 + $0x38] sm:$0xff]
        %v647 = vld [vmem:[%s340 + $0x40] sm:$0xff]
        %v648 = vld [vmem:[%s340 + $0x48] sm:$0xff]
        %v649 = vld [vmem:[%s340 + $0x50] sm:$0xff]
        %v650 = vld [vmem:[%s340 + $0x58] sm:$0xff]
        %v651 = vld [vmem:[%s340 + $0x60] sm:$0xff]
        %v652 = vld [vmem:[%s340 + $0x68] sm:$0xff]
        %v653 = vld [vmem:[%s340 + $0x70] sm:$0xff]
        %v654 = vld [vmem:[%s340 + $0x78] sm:$0xff]
        %v655 = vld [vmem:[#allocation8] sm:$0xff]
        %v656 = vld [vmem:[#allocation8 + $0x8] sm:$0xff]
        %v657 = vld [vmem:[#allocation8 + $0x10] sm:$0xff]
        %v658 = vld [vmem:[#allocation8 + $0x18] sm:$0xff]
        %v659 = vld [vmem:[#allocation8 + $0x20] sm:$0xff]
        %v660 = vld [vmem:[#allocation8 + $0x28] sm:$0xff]
        %v661 = vld [vmem:[#allocation8 + $0x30] sm:$0xff]
        %v662 = vld [vmem:[#allocation8 + $0x38] sm:$0xff]
        %v663 = vld [vmem:[#allocation8 + $0x40] sm:$0xff]
        %v664 = vld [vmem:[#allocation8 + $0x48] sm:$0xff]
        %v665 = vld [vmem:[#allocation8 + $0x50] sm:$0xff]
        %v666 = vld [vmem:[#allocation8 + $0x58] sm:$0xff]
        %v667 = vld [vmem:[#allocation8 + $0x60] sm:$0xff]
        %v668 = vld [vmem:[#allocation8 + $0x68] sm:$0xff]
        %v669 = vld [vmem:[#allocation8 + $0x70] sm:$0xff]
        %v670 = vld [vmem:[#allocation8 + $0x78] sm:$0xff]
        %v671 = vld [vmem:[#allocation8 + $0x80] sm:$0xff]
        %v672 = vld [vmem:[#allocation8 + $0x88] sm:$0xff]
        %v673 = vld [vmem:[#allocation8 + $0x90] sm:$0xff]
        %v674 = vld [vmem:[#allocation8 + $0x98] sm:$0xff]
        %v675 = vld [vmem:[#allocation8 + $0xa0] sm:$0xff]
        %v676 = vld [vmem:[#allocation8 + $0xa8] sm:$0xff]
        %v677 = vld [vmem:[#allocation8 + $0xb0] sm:$0xff]
        %v678 = vld [vmem:[#allocation8 + $0xb8] sm:$0xff]
        %v679 = vld [vmem:[#allocation8 + $0xc0] sm:$0xff]
        %v680 = vld [vmem:[#allocation8 + $0xc8] sm:$0xff]
        %v681 = vld [vmem:[#allocation8 + $0xd0] sm:$0xff]
        %v682 = vld [vmem:[#allocation8 + $0xd8] sm:$0xff]
        %v683 = vld [vmem:[#allocation8 + $0xe0] sm:$0xff]
        %v684 = vld [vmem:[#allocation8 + $0xe8] sm:$0xff]
        %v685 = vld [vmem:[#allocation8 + $0xf0] sm:$0xff]
        %v686 = vld [vmem:[#allocation8 + $0xf8] sm:$0xff]
        %v687 = vld [vmem:[#allocation8 + $0x100] sm:$0xff]
        %v688 = vld [vmem:[#allocation8 + $0x108] sm:$0xff]
        %v689 = vld [vmem:[#allocation8 + $0x110] sm:$0xff]
        %v690 = vld [vmem:[#allocation8 + $0x118] sm:$0xff]
        %v691 = vld [vmem:[#allocation8 + $0x120] sm:$0xff]
        %v692 = vld [vmem:[#allocation8 + $0x128] sm:$0xff]
        %v693 = vld [vmem:[#allocation8 + $0x130] sm:$0xff]
        %v694 = vld [vmem:[#allocation8 + $0x138] sm:$0xff]
        %v695 = vld [vmem:[#allocation8 + $0x140] sm:$0xff]
        %v696 = vld [vmem:[#allocation8 + $0x148] sm:$0xff]
        %v697 = vld [vmem:[#allocation8 + $0x150] sm:$0xff]
        %v698 = vld [vmem:[#allocation8 + $0x158] sm:$0xff]
        %v699 = vld [vmem:[#allocation8 + $0x160] sm:$0xff]
        %v700 = vld [vmem:[#allocation8 + $0x168] sm:$0xff]
        %v701 = vld [vmem:[#allocation8 + $0x170] sm:$0xff]
        %v702 = vld [vmem:[#allocation8 + $0x178] sm:$0xff]
        %v703 = vld [vmem:[#allocation8 + $0x180] sm:$0xff]
        %v704 = vld [vmem:[#allocation8 + $0x188] sm:$0xff]
        %v705 = vld [vmem:[#allocation8 + $0x190] sm:$0xff]
        %v706 = vld [vmem:[#allocation8 + $0x198] sm:$0xff]
        %v707 = vld [vmem:[#allocation8 + $0x1a0] sm:$0xff]
        %v708 = vld [vmem:[#allocation8 + $0x1a8] sm:$0xff]
        %v709 = vld [vmem:[#allocation8 + $0x1b0] sm:$0xff]
        %v710 = vld [vmem:[#allocation8 + $0x1b8] sm:$0xff]
        %v711 = vld [vmem:[#allocation8 + $0x1c0] sm:$0xff]
        %v712 = vld [vmem:[#allocation8 + $0x1c8] sm:$0xff]
        %v713 = vld [vmem:[#allocation8 + $0x1d0] sm:$0xff]
        %v714 = vld [vmem:[#allocation8 + $0x1d8] sm:$0xff]
        %v715 = vld [vmem:[#allocation8 + $0x1e0] sm:$0xff]
        %v716 = vld [vmem:[#allocation8 + $0x1e8] sm:$0xff]
        %v717 = vld [vmem:[#allocation8 + $0x1f0] sm:$0xff]
        %v718 = vld [vmem:[#allocation8 + $0x1f8] sm:$0xff]
        %v719 = vld [vmem:[#allocation2] sm:$0xff]
        %v720 = vld [vmem:[#allocation2 + $0x8] sm:$0xff]
        %v721 = vld [vmem:[#allocation2 + $0x10] sm:$0xff]
        %v722 = vld [vmem:[#allocation2 + $0x18] sm:$0xff]
        %v723 = vld [vmem:[#allocation2 + $0x20] sm:$0xff]
        %v724 = vld [vmem:[#allocation2 + $0x28] sm:$0xff]
        %v725 = vld [vmem:[#allocation2 + $0x30] sm:$0xff]
        %v726 = vld [vmem:[#allocation2 + $0x38] sm:$0xff]
        %v727 = vld [vmem:[#allocation2 + $0x40] sm:$0xff]
        %v728 = vld [vmem:[#allocation2 + $0x48] sm:$0xff]
        %v729 = vld [vmem:[#allocation2 + $0x50] sm:$0xff]
        %v730 = vld [vmem:[#allocation2 + $0x58] sm:$0xff]
        %v731 = vld [vmem:[#allocation2 + $0x60] sm:$0xff]
        %v732 = vld [vmem:[#allocation2 + $0x68] sm:$0xff]
        %v733 = vld [vmem:[#allocation2 + $0x70] sm:$0xff]
        %v734 = vld [vmem:[#allocation2 + $0x78] sm:$0xff]
        %v735 = vld [vmem:[#allocation11] sm:$0xff]
        %v736 = vld [vmem:[#allocation11 + $0x8] sm:$0xff]
        %v737 = vld [vmem:[#allocation11 + $0x10] sm:$0xff]
        %v738 = vld [vmem:[#allocation11 + $0x18] sm:$0xff]
        %v739 = vld [vmem:[#allocation11 + $0x20] sm:$0xff]
        %v740 = vld [vmem:[#allocation11 + $0x28] sm:$0xff]
        %v741 = vld [vmem:[#allocation11 + $0x30] sm:$0xff]
        %v742 = vld [vmem:[#allocation11 + $0x38] sm:$0xff]
        %v743 = vld [vmem:[#allocation11 + $0x40] sm:$0xff]
        %v744 = vld [vmem:[#allocation11 + $0x48] sm:$0xff]
        %v745 = vld [vmem:[#allocation11 + $0x50] sm:$0xff]
        %v746 = vld [vmem:[#allocation11 + $0x58] sm:$0xff]
        %v747 = vld [vmem:[#allocation11 + $0x60] sm:$0xff]
        %v748 = vld [vmem:[#allocation11 + $0x68] sm:$0xff]
        %v749 = vld [vmem:[#allocation11 + $0x70] sm:$0xff]
        %v750 = vld [vmem:[#allocation11 + $0x78] sm:$0xff]
        %v751 = vld [vmem:[#allocation11 + $0x80] sm:$0xff]
        %v752 = vld [vmem:[#allocation11 + $0x88] sm:$0xff]
        %v753 = vld [vmem:[#allocation11 + $0x90] sm:$0xff]
        %v754 = vld [vmem:[#allocation11 + $0x98] sm:$0xff]
        %v755 = vld [vmem:[#allocation11 + $0xa0] sm:$0xff]
        %v756 = vld [vmem:[#allocation11 + $0xa8] sm:$0xff]
        %v757 = vld [vmem:[#allocation11 + $0xb0] sm:$0xff]
        %v758 = vld [vmem:[#allocation11 + $0xb8] sm:$0xff]
        %v759 = vld [vmem:[#allocation11 + $0xc0] sm:$0xff]
        %v760 = vld [vmem:[#allocation11 + $0xc8] sm:$0xff]
        %v761 = vld [vmem:[#allocation11 + $0xd0] sm:$0xff]
        %v762 = vld [vmem:[#allocation11 + $0xd8] sm:$0xff]
        %v763 = vld [vmem:[#allocation11 + $0xe0] sm:$0xff]
        %v764 = vld [vmem:[#allocation11 + $0xe8] sm:$0xff]
        %v765 = vld [vmem:[#allocation11 + $0xf0] sm:$0xff]
        %v766 = vld [vmem:[#allocation11 + $0xf8] sm:$0xff]
        %v767 = vld [vmem:[#allocation11 + $0x100] sm:$0xff]
        %v768 = vld [vmem:[#allocation11 + $0x108] sm:$0xff]
        %v769 = vld [vmem:[#allocation11 + $0x110] sm:$0xff]
        %v770 = vld [vmem:[#allocation11 + $0x118] sm:$0xff]
        %v771 = vld [vmem:[#allocation11 + $0x120] sm:$0xff]
        %v772 = vld [vmem:[#allocation11 + $0x128] sm:$0xff]
        %v773 = vld [vmem:[#allocation11 + $0x130] sm:$0xff]
        %v774 = vld [vmem:[#allocation11 + $0x138] sm:$0xff]
        %v775 = vld [vmem:[#allocation11 + $0x140] sm:$0xff]
        %v776 = vld [vmem:[#allocation11 + $0x148] sm:$0xff]
        %v777 = vld [vmem:[#allocation11 + $0x150] sm:$0xff]
        %v778 = vld [vmem:[#allocation11 + $0x158] sm:$0xff]
        %v779 = vld [vmem:[#allocation11 + $0x160] sm:$0xff]
        %v780 = vld [vmem:[#allocation11 + $0x168] sm:$0xff]
        %v781 = vld [vmem:[#allocation11 + $0x170] sm:$0xff]
        %v782 = vld [vmem:[#allocation11 + $0x178] sm:$0xff]
        %v783 = vld [vmem:[#allocation11 + $0x180] sm:$0xff]
        %v784 = vld [vmem:[#allocation11 + $0x188] sm:$0xff]
        %v785 = vld [vmem:[#allocation11 + $0x190] sm:$0xff]
        %v786 = vld [vmem:[#allocation11 + $0x198] sm:$0xff]
        %v787 = vld [vmem:[#allocation11 + $0x1a0] sm:$0xff]
        %v788 = vld [vmem:[#allocation11 + $0x1a8] sm:$0xff]
        %v789 = vld [vmem:[#allocation11 + $0x1b0] sm:$0xff]
        %v790 = vld [vmem:[#allocation11 + $0x1b8] sm:$0xff]
        %v791 = vld [vmem:[#allocation11 + $0x1c0] sm:$0xff]
        %v792 = vld [vmem:[#allocation11 + $0x1c8] sm:$0xff]
        %v793 = vld [vmem:[#allocation11 + $0x1d0] sm:$0xff]
        %v794 = vld [vmem:[#allocation11 + $0x1d8] sm:$0xff]
        %v795 = vld [vmem:[#allocation11 + $0x1e0] sm:$0xff]
        %v796 = vld [vmem:[#allocation11 + $0x1e8] sm:$0xff]
        %v797 = vld [vmem:[#allocation11 + $0x1f0] sm:$0xff]
        %v798 = vld [vmem:[#allocation11 + $0x1f8] sm:$0xff]
        %799 = vmatprep.subr.mxu0 %v736
        %800 = vmatpush1.msra.mxu0 %v735
        %801 = vmatprep.subr.mxu0 %v738
        %802 = vmatpush1.msra.mxu0 %v737
        %803 = vmatprep.subr.mxu0 %v740
        %804 = vmatpush1.msra.mxu0 %v739
        %805 = vmatprep.subr.mxu0 %v742
        %806 = vmatpush1.msra.mxu0 %v741
        %807 = vmatprep.subr.mxu0 %v744
        %808 = vmatpush1.msra.mxu0 %v743
        %809 = vmatprep.subr.mxu0 %v746
        %810 = vmatpush1.msra.mxu0 %v745
        %811 = vmatprep.subr.mxu0 %v748
        %812 = vmatpush1.msra.mxu0 %v747
        %813 = vmatprep.subr.mxu0 %v750
        %814 = vmatpush1.msra.mxu0 %v749
        %815 = vmatprep.subr.mxu0 %v752
        %816 = vmatpush1.msra.mxu0 %v751
        %817 = vmatprep.subr.mxu0 %v754
        %818 = vmatpush1.msra.mxu0 %v753
        %819 = vmatprep.subr.mxu0 %v756
        %820 = vmatpush1.msra.mxu0 %v755
        %821 = vmatprep.subr.mxu0 %v758
        %822 = vmatpush1.msra.mxu0 %v757
        %823 = vmatprep.subr.mxu0 %v760
        %824 = vmatpush1.msra.mxu0 %v759
        %825 = vmatprep.subr.mxu0 %v762
        %826 = vmatpush1.msra.mxu0 %v761
        %827 = vmatprep.subr.mxu0 %v764
        %828 = vmatpush1.msra.mxu0 %v763
        %829 = vmatprep.subr.mxu0 %v766
        %830 = vmatpush1.msra.mxu0 %v765
        %831 = vmatprep.subr.mxu0 %v768
        %832 = vmatpush1.msra.mxu0 %v767
        %833 = vmatprep.subr.mxu0 %v770
        %834 = vmatpush1.msra.mxu0 %v769
        %835 = vmatprep.subr.mxu0 %v772
        %836 = vmatpush1.msra.mxu0 %v771
        %837 = vmatprep.subr.mxu0 %v774
        %838 = vmatpush1.msra.mxu0 %v773
        %839 = vmatprep.subr.mxu0 %v776
        %840 = vmatpush1.msra.mxu0 %v775
        %841 = vmatprep.subr.mxu0 %v778
        %842 = vmatpush1.msra.mxu0 %v777
        %843 = vmatprep.subr.mxu0 %v780
        %844 = vmatpush1.msra.mxu0 %v779
        %845 = vmatprep.subr.mxu0 %v782
        %846 = vmatpush1.msra.mxu0 %v781
        %847 = vmatprep.subr.mxu0 %v784
        %848 = vmatpush1.msra.mxu0 %v783
        %849 = vmatprep.subr.mxu0 %v786
        %850 = vmatpush1.msra.mxu0 %v785
        %851 = vmatprep.subr.mxu0 %v788
        %852 = vmatpush1.msra.mxu0 %v787
        %853 = vmatprep.subr.mxu0 %v790
        %854 = vmatpush1.msra.mxu0 %v789
        %855 = vmatprep.subr.mxu0 %v792
        %856 = vmatpush1.msra.mxu0 %v791
        %857 = vmatprep.subr.mxu0 %v794
        %858 = vmatpush1.msra.mxu0 %v793
        %859 = vmatprep.subr.mxu0 %v796
        %860 = vmatpush1.msra.mxu0 %v795
        %861 = vmatprep.subr.mxu0 %v798
        %862 = vmatpush1.msra.mxu0 %v797
        %863 = vmatprep.mubr.f32.mxu0 %v720
        %864 = vmatmul.mubr.f32.gmra.mrb[0].mxu0 %v719
        %v865 = vpop.f32.mrb[0].mxu0
        %v866 = vadd.f32 0.0, %v865
        %v867 = vpop.f32.mrb[0].mxu0
        %v868 = vadd.f32 0.0, %v867
        %869 = vmatprep.mubr.f32.mxu0 %v722
        %870 = vmatmul.mubr.f32.gmra.mrb[0].mxu0 %v721
        %v871 = vpop.f32.mrb[0].mxu0
        %v872 = vadd.f32 0.0, %v871
        %v873 = vpop.f32.mrb[0].mxu0
        %v874 = vadd.f32 0.0, %v873
        %875 = vmatprep.mubr.f32.mxu0 %v724
        %876 = vmatmul.mubr.f32.gmra.mrb[0].mxu0 %v723
        %v877 = vpop.f32.mrb[0].mxu0
        %v878 = vadd.f32 0.0, %v877
        %v879 = vpop.f32.mrb[0].mxu0
        %v880 = vadd.f32 0.0, %v879
        %881 = vmatprep.mubr.f32.mxu0 %v726
        %882 = vmatmul.mubr.f32.gmra.mrb[0].mxu0 %v725
        %v883 = vpop.f32.mrb[0].mxu0
        %v884 = vadd.f32 0.0, %v883
        %v885 = vpop.f32.mrb[0].mxu0
        %v886 = vadd.f32 0.0, %v885
        %887 = vmatprep.mubr.f32.mxu0 %v728
        %888 = vmatmul.mubr.f32.gmra.mrb[0].mxu0 %v727
        %v889 = vpop.f32.mrb[0].mxu0
        %v890 = vadd.f32 0.0, %v889
        %v891 = vpop.f32.mrb[0].mxu0
        %v892 = vadd.f32 0.0, %v891
        %893 = vmatprep.mubr.f32.mxu0 %v730
        %894 = vmatmul.mubr.f32.gmra.mrb[0].mxu0 %v729
        %v895 = vpop.f32.mrb[0].mxu0
        %v896 = vadd.f32 0.0, %v895
        %v897 = vpop.f32.mrb[0].mxu0
        %v898 = vadd.f32 0.0, %v897
        %899 = vmatprep.mubr.f32.mxu0 %v732
        %900 = vmatmul.mubr.f32.gmra.mrb[0].mxu0 %v731
        %v901 = vpop.f32.mrb[0].mxu0
        %v902 = vadd.f32 0.0, %v901
        %v903 = vpop.f32.mrb[0].mxu0
        %v904 = vadd.f32 0.0, %v903
        %905 = vmatprep.mubr.f32.mxu0 %v734
        %906 = vmatmul.mubr.f32.gmra.mrb[0].mxu0 %v733
        %v907 = vpop.f32.mrb[0].mxu0
        %v908 = vadd.f32 0.0, %v907
        %v909 = vpop.f32.mrb[0].mxu0
        %v910 = vadd.f32 0.0, %v909
        %911 = vdwg.mxu0
        %912 = vmatprep.subr.mxu0 %v656
        %913 = vmatpush1.msra.mxu0 %v655
        %914 = vmatprep.subr.mxu0 %v658
        %915 = vmatpush1.msra.mxu0 %v657
        %916 = vmatprep.subr.mxu0 %v660
        %917 = vmatpush1.msra.mxu0 %v659
        %918 = vmatprep.subr.mxu0 %v662
        %919 = vmatpush1.msra.mxu0 %v661
        %920 = vmatprep.subr.mxu0 %v664
        %921 = vmatpush1.msra.mxu0 %v663
        %922 = vmatprep.subr.mxu0 %v666
        %923 = vmatpush1.msra.mxu0 %v665
        %924 = vmatprep.subr.mxu0 %v668
        %925 = vmatpush1.msra.mxu0 %v667
        %926 = vmatprep.subr.mxu0 %v670
        %927 = vmatpush1.msra.mxu0 %v669
        %928 = vmatprep.subr.mxu0 %v672
        %929 = vmatpush1.msra.mxu0 %v671
        %930 = vmatprep.subr.mxu0 %v674
        %931 = vmatpush1.msra.mxu0 %v673
        %932 = vmatprep.subr.mxu0 %v676
        %933 = vmatpush1.msra.mxu0 %v675
        %934 = vmatprep.subr.mxu0 %v678
        %935 = vmatpush1.msra.mxu0 %v677
        %936 = vmatprep.subr.mxu0 %v680
        %937 = vmatpush1.msra.mxu0 %v679
        %938 = vmatprep.subr.mxu0 %v682
        %939 = vmatpush1.msra.mxu0 %v681
        %940 = vmatprep.subr.mxu0 %v684
        %941 = vmatpush1.msra.mxu0 %v683
        %942 = vmatprep.subr.mxu0 %v686
        %943 = vmatpush1.msra.mxu0 %v685
        %944 = vmatprep.subr.mxu0 %v688
        %945 = vmatpush1.msra.mxu0 %v687
        %946 = vmatprep.subr.mxu0 %v690
        %947 = vmatpush1.msra.mxu0 %v689
        %948 = vmatprep.subr.mxu0 %v692
        %949 = vmatpush1.msra.mxu0 %v691
        %950 = vmatprep.subr.mxu0 %v694
        %951 = vmatpush1.msra.mxu0 %v693
        %952 = vmatprep.subr.mxu0 %v696
        %953 = vmatpush1.msra.mxu0 %v695
        %954 = vmatprep.subr.mxu0 %v698
        %955 = vmatpush1.msra.mxu0 %v697
        %956 = vmatprep.subr.mxu0 %v700
        %957 = vmatpush1.msra.mxu0 %v699
        %958 = vmatprep.subr.mxu0 %v702
        %959 = vmatpush1.msra.mxu0 %v701
        %960 = vmatprep.subr.mxu0 %v704
        %961 = vmatpush1.msra.mxu0 %v703
        %962 = vmatprep.subr.mxu0 %v706
        %963 = vmatpush1.msra.mxu0 %v705
        %964 = vmatprep.subr.mxu0 %v708
        %965 = vmatpush1.msra.mxu0 %v707
        %966 = vmatprep.subr.mxu0 %v710
        %967 = vmatpush1.msra.mxu0 %v709
        %968 = vmatprep.subr.mxu0 %v712
        %969 = vmatpush1.msra.mxu0 %v711
        %970 = vmatprep.subr.mxu0 %v714
        %971 = vmatpush1.msra.mxu0 %v713
        %972 = vmatprep.subr.mxu0 %v716
        %973 = vmatpush1.msra.mxu0 %v715
        %974 = vmatprep.subr.mxu0 %v718
        %975 = vmatpush1.msra.mxu0 %v717
        %976 = vmatprep.mubr.f32.mxu0 %v640
        %977 = vmatmul.mubr.f32.gmra.mrb[0].mxu0 %v639
        %v978 = vpop.f32.mrb[0].mxu0
        %v979 = vadd.f32 %v866, %v978
        %v980 = vpop.f32.mrb[0].mxu0
        %v981 = vadd.f32 %v868, %v980
        %982 = vmatprep.mubr.f32.mxu0 %v642
        %983 = vmatmul.mubr.f32.gmra.mrb[0].mxu0 %v641
        %v984 = vpop.f32.mrb[0].mxu0
        %v985 = vadd.f32 %v872, %v984
        %v986 = vpop.f32.mrb[0].mxu0
        %v987 = vadd.f32 %v874, %v986
        %988 = vmatprep.mubr.f32.mxu0 %v644
        %989 = vmatmul.mubr.f32.gmra.mrb[0].mxu0 %v643
        %v990 = vpop.f32.mrb[0].mxu0
        %v991 = vadd.f32 %v878, %v990
        %v992 = vpop.f32.mrb[0].mxu0
        %v993 = vadd.f32 %v880, %v992
        %994 = vmatprep.mubr.f32.mxu0 %v646
        %995 = vmatmul.mubr.f32.gmra.mrb[0].mxu0 %v645
        %v996 = vpop.f32.mrb[0].mxu0
        %v997 = vadd.f32 %v884, %v996
        %v998 = vpop.f32.mrb[0].mxu0
        %v999 = vadd.f32 %v886, %v998
        %1000 = vmatprep.mubr.f32.mxu0 %v648
        %1001 = vmatmul.mubr.f32.gmra.mrb[0].mxu0 %v647
        %v1002 = vpop.f32.mrb[0].mxu0
        %v1003 = vadd.f32 %v890, %v1002
        %v1004 = vpop.f32.mrb[0].mxu0
        %v1005 = vadd.f32 %v892, %v1004
        %1006 = vmatprep.mubr.f32.mxu0 %v650
        %1007 = vmatmul.mubr.f32.gmra.mrb[0].mxu0 %v649
        %v1008 = vpop.f32.mrb[0].mxu0
        %v1009 = vadd.f32 %v896, %v1008
        %v1010 = vpop.f32.mrb[0].mxu0
        %v1011 = vadd.f32 %v898, %v1010
        %1012 = vmatprep.mubr.f32.mxu0 %v652
        %1013 = vmatmul.mubr.f32.gmra.mrb[0].mxu0 %v651
        %v1014 = vpop.f32.mrb[0].mxu0
        %v1015 = vadd.f32 %v902, %v1014
        %v1016 = vpop.f32.mrb[0].mxu0
        %v1017 = vadd.f32 %v904, %v1016
        %1018 = vmatprep.mubr.f32.mxu0 %v654
        %1019 = vmatmul.mubr.f32.gmra.mrb[0].mxu0 %v653
        %v1020 = vpop.f32.mrb[0].mxu0
        %v1021 = vadd.f32 %v908, %v1020
        %v1022 = vpop.f32.mrb[0].mxu0
        %v1023 = vadd.f32 %v910, %v1022
        %1024 = vdwg.mxu0
        %v1025 = vld [vmem:[%s406] sm:$0x3]
        %v1027 = vlaneseq
        %v1028 = vshrl.u32 %v1027, 7
        %v1029 = vsub.s32 0, %v1028
        %v1030 = vrot.slane %v1025, %v1029
        %v1031 = vlaneseq
        %v1032 = vshrl.u32 %v1031, 7
        %v1033 = vsub.s32 1, %v1032
        %v1034 = vrot.slane %v1025, %v1033
        %v1037 = vadd.f32 %v979, %v1030
        %v1038 = vadd.f32 %v981, %v1034
        %v1039 = vadd.f32 %v985, %v1030
        %v1040 = vadd.f32 %v987, %v1034
        %v1041 = vadd.f32 %v991, %v1030
        %v1042 = vadd.f32 %v993, %v1034
        %v1043 = vadd.f32 %v997, %v1030
        %v1044 = vadd.f32 %v999, %v1034
        %v1045 = vadd.f32 %v1003, %v1030
        %v1046 = vadd.f32 %v1005, %v1034
        %v1047 = vadd.f32 %v1009, %v1030
        %v1048 = vadd.f32 %v1011, %v1034
        %v1049 = vadd.f32 %v1015, %v1030
        %v1050 = vadd.f32 %v1017, %v1034
        %v1051 = vadd.f32 %v1021, %v1030
        %v1052 = vadd.f32 %v1023, %v1034
        %v1053 = vmax.f32 %v1037, 0.0
        %v1054 = vmax.f32 %v1038, 0.0
        %v1055 = vmax.f32 %v1039, 0.0
        %v1056 = vmax.f32 %v1040, 0.0
        %v1057 = vmax.f32 %v1041, 0.0
        %v1058 = vmax.f32 %v1042, 0.0
        %v1059 = vmax.f32 %v1043, 0.0
        %v1060 = vmax.f32 %v1044, 0.0
        %v1061 = vmax.f32 %v1045, 0.0
        %v1062 = vmax.f32 %v1046, 0.0
        %v1063 = vmax.f32 %v1047, 0.0
        %v1064 = vmax.f32 %v1048, 0.0
        %v1065 = vmax.f32 %v1049, 0.0
        %v1066 = vmax.f32 %v1050, 0.0
        %v1067 = vmax.f32 %v1051, 0.0
        %v1068 = vmax.f32 %v1052, 0.0
        %1069 = vst [vmem:[%s398] sm:$0xff] %v1053
        %1070 = vst [vmem:[%s398 + $0x8] sm:$0xff] %v1054
        %1071 = vst [vmem:[%s398 + $0x10] sm:$0xff] %v1055
        %1072 = vst [vmem:[%s398 + $0x18] sm:$0xff] %v1056
        %1073 = vst [vmem:[%s398 + $0x20] sm:$0xff] %v1057
        %1074 = vst [vmem:[%s398 + $0x28] sm:$0xff] %v1058
        %1075 = vst [vmem:[%s398 + $0x30] sm:$0xff] %v1059
        %1076 = vst [vmem:[%s398 + $0x38] sm:$0xff] %v1060
        %1077 = vst [vmem:[%s398 + $0x40] sm:$0xff] %v1061
        %1078 = vst [vmem:[%s398 + $0x48] sm:$0xff] %v1062
        %1079 = vst [vmem:[%s398 + $0x50] sm:$0xff] %v1063
        %1080 = vst [vmem:[%s398 + $0x58] sm:$0xff] %v1064
        %1081 = vst [vmem:[%s398 + $0x60] sm:$0xff] %v1065
        %1082 = vst [vmem:[%s398 + $0x68] sm:$0xff] %v1066
        %1083 = vst [vmem:[%s398 + $0x70] sm:$0xff] %v1067
        %1084 = vst [vmem:[%s398 + $0x78] sm:$0xff] %v1068
        %s1085 = sand.u32 %s200, 1
        %s1086 = scalar_lea.sflag [#allocation5], %s1085
        %s1087 = sand.u32 %s200, 1
        %s1088 = smul.addr %s1087, 128
        %s1089 = scalar_lea.vmem [#allocation12], %s1088
        // Predicated region
        $region69: #{tpu_custom_call.1} parent=43 // pred_check
          %p1090 = pneg %p210
        $region70: #{tpu_custom_call.1} parent=43 // pred_check_branch
          %1092 = sbr.rel (%p1090) target = $region72
        $region71: #{tpu_custom_call.1} parent=43 // pred_region
          %s1093 = smul.u32 8, %s31
          %s1094 = smul.u32 2, %s32
          %s1096 = ssub.s32 2048, 2048
          %1097 = vsyncadd %s1086, %s1096
          %s1098 = smul.addr %s1093, 2
          %s1099 = sadd.s32 %s1094, %s1098
          %s1100 = smul.addr %s1099, 128
          %s1101 = scalar_lea.hbm %s6, %s1100
          %s1102 = sshll.u32 %s1089, 4
          %s1103 = int_to_ptr.vmem [resolvable:$true] %s1102
          %1108 = dma.vmem_to_hbm [thread:$0]  %s1103, 2048, %s1101, %s1086, 256, 256, 16
        $region72: #{tpu_custom_call.1} parent=43 // pred_fallthru
          _
      $region44: #{tpu_custom_call.1} parent=5 // pred_fallthru
        _
      %p1109 = scmp.le.s32.totalorder 2, %s22
      // Predicated region
      $region73: #{tpu_custom_call.1} parent=5 // pred_check
        %p1110 = pneg %p1109
      $region74: #{tpu_custom_call.1} parent=5 // pred_check_branch
        %1112 = sbr.rel (%p1110) target = $region76
      $region75: #{tpu_custom_call.1} parent=5 // pred_region
        %s1113 = ssub.s32 %s22, 2
        // Predicated region
        $region77: #{tpu_custom_call.1} parent=75 // pred_check
          %p1114 = pneg %p216
        $region78: #{tpu_custom_call.1} parent=75 // pred_check_branch
          %1116 = sbr.rel (%p1114) target = $region80
        $region79: #{tpu_custom_call.1} parent=75 // pred_region
          %s1117 = sand.u32 %s201, 1
          %s1118 = scalar_lea.sflag [#allocation5], %s1117
          %s1119 = sand.u32 %s201, 1
          %s1120 = smul.addr %s1119, 128
          %s1121 = scalar_lea.vmem [#allocation12], %s1120
          %1122 = dma.done %s1118, 2048
        $region80: #{tpu_custom_call.1} parent=75 // pred_fallthru
          _
      $region76: #{tpu_custom_call.1} parent=5 // pred_fallthru
        _
    $region6: #{tpu_custom_call.1} parent=1 // loop_footer
      %s26 = sadd.s32 1, %s22
    $region7: #{tpu_custom_call.1} parent=1 // loop_footer_branch
      %21 = sbr.rel target = $region3
    $region8: #{tpu_custom_call.1} parent=1 // loop_exit
      _
    %1123 = vsyncpa [#allocation4], 1
    %s1124 = scalar_lea.sflag [#allocation4], 1
    %1125 = vsyncpa %s1124, 1
    %1126 = vsyncpa [#allocation7], 1
    %s1127 = scalar_lea.sflag [#allocation7], 1
    %1128 = vsyncpa %s1127, 1
    %1129 = vsyncpa [#allocation10], 1
    %1130 = vsyncpa [#allocation5], 1
    %s1131 = scalar_lea.sflag [#allocation5], 1
    %1132 = vsyncpa %s1131, 1

</llo_original>
